<compile_context>
chip_gen: v7x
topology: tpu7x:2x2x1
jax: 0.10.0
libtpu: 0.0.40
codegen_flags: <defaults>
</compile_context>

<pallas_src>
import jax
import jax.numpy as jnp
from jax.experimental import pallas as pl
from jax.experimental.pallas import tpu as pltpu


# --------------------------------------------------------------------------- #
# Kernel
# --------------------------------------------------------------------------- #
def _graph_learner_kernel(alpha, m, hd, bb, epilogue_dtype):
    def kernel(emb_ref, w12_ref, b12_ref, out_ref):
        # emb_ref : (bb, m, hd)  bf16      w12_ref : (hd, 2*hd) bf16
        # b12_ref : (1, 2*hd)    f32       out_ref : (bb, m, m)

        # ---- fused projection: one (bb*m, hd) @ (hd, 2*hd) MXU pass ---------
        # (reshape is a free view when m is sublane-aligned; tiny otherwise)
        e2 = emb_ref[...].reshape(bb * m, hd)
        h = jnp.dot(e2, w12_ref[...], preferred_element_type=jnp.float32)
        x12 = jnp.tanh(h + b12_ref[...])                   # (bb*m, 2*hd) = [x1 | x2]

        # ---- single antisymmetric adjacency matmul --------------------------
        #   Y = [x1 | x2],  Z = [x2 | -x1]   =>   Y @ Z^T = x1 x2^T - x2 x1^T
        y = x12.astype(jnp.bfloat16).reshape(bb, m, 2 * hd)
        z = jnp.concatenate([x12[:, hd:], -x12[:, :hd]], axis=-1)
        z = z.astype(jnp.bfloat16).reshape(bb, m, 2 * hd)

        adj = jnp.einsum("bmk,bnk->bmn", y, z,
                         preferred_element_type=jnp.float32)    # (bb, m, m) f32
        adj = (alpha * adj).astype(epilogue_dtype)
        out_ref[...] = jnp.maximum(jnp.tanh(adj), 0).astype(out_ref.dtype)

    return kernel


# --------------------------------------------------------------------------- #
# Host-side sizing helpers
# --------------------------------------------------------------------------- #
def _vmem_capacity_bytes():
    """Physical VMEM per TensorCore; conservative fallback if undetectable."""
    try:
        cap = int(pltpu.get_tpu_info().vmem_capacity_bytes)
        if cap > 0:
            return cap
    except Exception:
        pass
    try:
        kind = jax.devices()[0].device_kind.lower()
    except Exception:
        kind = ""
    if "v7" in kind:
        return 64 * 1024 * 1024
    if "v5" in kind or "v6" in kind:
        return 128 * 1024 * 1024
    return 64 * 1024 * 1024          # conservative: valid on every generation


def _epilogue_supports_bf16():
    """v6e/v7x have bf16 VPU/EUP paths; v5e and older do not."""
    try:
        kind = jax.devices()[0].device_kind.lower()
    except Exception:
        return False
    return ("v6" in kind) or ("v7" in kind) or ("trillium" in kind)


def _pick_batch_group(B, m, hd, out_bytes, budget_bytes):
    """Largest divisor of B (capped at B//2 so the grid has >= 2 steps, keeping
    both v7x TensorCores busy) whose per-step working set fits the budget.

    Only the emb and out blocks are double-buffered by the BlockSpec pipeline;
    in-kernel intermediates (x12 / y / z / adjacency accumulator) are
    single-instance.
    """
    per_batch = (
        2 * m * hd * 2              # emb block (bf16), 2 pipeline buffers
        + 2 * m * m * out_bytes     # out block,        2 pipeline buffers
        + m * 2 * hd * 4            # x12 (f32)
        + 2 * m * 2 * hd * 2        # y, z (bf16)
        + m * m * 4                 # f32 adjacency accumulator / epilogue temp
    )
    resident = 2 * (hd * 2 * hd * 2 + 2 * hd * 4)        # w12 / b12 buffers
    avail = budget_bytes - resident - 2 * 1024 * 1024    # compiler scratch slack
    bb_cap = max(1, B // 2)
    best = 1
    for bb in range(1, bb_cap + 1):
        if B % bb == 0 and bb * per_batch <= avail:
            best = bb
    # Falls back to bb=1 (still correct) when nothing fits; a single batch that
    # overflows VMEM would need (m, m) tiling -- see module-level TODO.
    return best


# --------------------------------------------------------------------------- #
# Wrapper
# --------------------------------------------------------------------------- #
def graph_learner_forward(emb, w1, b1, w2, b2, alpha=1.0, out_dtype=jnp.bfloat16):
    """emb: [B, m, hd]; w1/w2: [hd, hd] (PyTorch [out, in] layout); b1/b2: [hd].

    Returns relu(tanh(alpha * (x1 x2^T - x2 x1^T))) with x_i = tanh(alpha*lin_i(emb)).
    Matmuls run in bf16 with f32 accumulation; the output defaults to bf16
    (values lie in [0, 1)) -- pass out_dtype=jnp.float32 for an f32 result.
    """
    B, m, hd = emb.shape
    alpha = float(alpha)
    out_dtype = jnp.dtype(out_dtype)

    # Host-side prep: fuse the two linears, fold alpha, cast matmul operands.
    w1t = jnp.asarray(w1, jnp.float32).T
    w2t = jnp.asarray(w2, jnp.float32).T
    w12 = (jnp.concatenate([w1t, w2t], axis=1) * alpha).astype(jnp.bfloat16)   # (hd, 2hd)
    b12 = (jnp.concatenate([jnp.asarray(b1, jnp.float32),
                            jnp.asarray(b2, jnp.float32)]) * alpha
           ).reshape(1, 2 * hd)                                                # f32
    emb_bf16 = jnp.asarray(emb, jnp.bfloat16)

    vmem_budget = int(0.75 * _vmem_capacity_bytes())   # ~48 MiB v7x, ~96 MiB v5e/v6e
    bb = _pick_batch_group(B, m, hd, out_dtype.itemsize, vmem_budget)
    grid = (B // bb,)

    # tanh/relu epilogue in bf16 on v6e/v7x (bf16 EUP/VPU); f32 on v5e & older.
    epilogue_dtype = (jnp.bfloat16
                      if (out_dtype == jnp.bfloat16 and _epilogue_supports_bf16())
                      else jnp.float32)

    return pl.pallas_call(
        _graph_learner_kernel(alpha, m, hd, bb, epilogue_dtype),
        out_shape=jax.ShapeDtypeStruct((B, m, m), out_dtype),
        grid_spec=pltpu.PrefetchScalarGridSpec(
            num_scalar_prefetch=0,
            grid=grid,
            in_specs=[
                pl.BlockSpec((bb, m, hd), lambda g: (g, 0, 0)),   # emb, bb batches/step
                pl.BlockSpec((hd, 2 * hd), lambda g: (0, 0)),     # fused weights (resident)
                pl.BlockSpec((1, 2 * hd), lambda g: (0, 0)),      # fused bias   (resident)
            ],
            out_specs=pl.BlockSpec((bb, m, m), lambda g: (g, 0, 0)),
        ),
        compiler_params=pltpu.CompilerParams(
            dimension_semantics=("parallel",),
            vmem_limit_bytes=vmem_budget,
        ),
    )(emb_bf16, w12, b12)


# --------------------------------------------------------------------------- #
# Pure-JAX f32 reference mirroring the PyTorch forward
# --------------------------------------------------------------------------- #
def graph_learner_ref(emb, w1, b1, w2, b2, alpha=1.0):
    x1 = jnp.tanh(alpha * (jnp.einsum("bmh,oh->bmo", emb, w1) + b1))
    x2 = jnp.tanh(alpha * (jnp.einsum("bmh,oh->bmo", emb, w2) + b2))
    adj = jnp.einsum("bmh,bnh->bmn", x1, x2) - jnp.einsum("bmh,bnh->bmn", x2, x1)
    return jnp.maximum(jnp.tanh(alpha * adj), 0.0)


if __name__ == "__main__":
    B, m, hd = 2, 16, 32
    alpha = 1.0

    key = jax.random.PRNGKey(0)
    k_emb, k_w1, k_b1, k_w2, k_b2 = jax.random.split(key, 5)

    emb = jax.random.normal(k_emb, (B, m, hd), dtype=jnp.float32)
    bound = 1.0 / (hd ** 0.5)
    w1 = jax.random.uniform(k_w1, (hd, hd), jnp.float32, -bound, bound)  # [out, in]
    b1 = jax.random.uniform(k_b1, (hd,), jnp.float32, -bound, bound)
    w2 = jax.random.uniform(k_w2, (hd, hd), jnp.float32, -bound, bound)
    b2 = jax.random.uniform(k_b2, (hd,), jnp.float32, -bound, bound)

    out = graph_learner_forward(emb, w1, b1, w2, b2, alpha=alpha)
    out = jax.block_until_ready(out)

    ref = graph_learner_ref(emb, w1, b1, w2, b2, alpha=alpha)
    assert out.shape == (B, m, m)
    # bf16 matmul operands + bf16 output with f32 accumulation -> loose tol.
    assert jnp.allclose(out.astype(jnp.float32), ref, atol=5e-2, rtol=5e-2), \
        "mismatch vs reference"

    print("KERNEL_OK")
</pallas_src>

<mosaic_0001>
module attributes {stable_mosaic.version = 11 : i64} {
  func.func @kernel(%arg0: i32, %arg1: memref<1x16x32xbf16, #tpu.memory_space<vmem>>, %arg2: memref<32x64xbf16, #tpu.memory_space<vmem>>, %arg3: memref<1x64xf32, #tpu.memory_space<vmem>>, %arg4: memref<1x16x16xbf16, #tpu.memory_space<vmem>>) attributes {dimension_semantics = [#tpu.dimension_semantics<parallel>], iteration_bounds = array<i64: 2>, scalar_prefetch = 0 : i64, scratch_operands = 0 : i64, tpu.core_type = #tpu.core_type<tc>, window_params = [{transform_indices = @transform_0, window_bounds = array<i64: 1, 16, 32>}, {pipeline_mode = #tpu.pipeline_mode<synchronous>, transform_indices = @transform_1, window_bounds = array<i64: 32, 64>}, {pipeline_mode = #tpu.pipeline_mode<synchronous>, transform_indices = @transform_2, window_bounds = array<i64: 1, 64>}, {transform_indices = @transform_3, window_bounds = array<i64: 1, 16, 16>}]} {
    %c0 = arith.constant 0 : index
    %c0_0 = arith.constant 0 : index
    %c0_1 = arith.constant 0 : index
    %0 = vector.load %arg1[%c0, %c0_0, %c0_1] : memref<1x16x32xbf16, #tpu.memory_space<vmem>>, vector<1x16x32xbf16>
    %1 = vector.shape_cast %0 : vector<1x16x32xbf16> to vector<16x32xbf16>
    %c0_2 = arith.constant 0 : index
    %c0_3 = arith.constant 0 : index
    %2 = vector.load %arg2[%c0_2, %c0_3] : memref<32x64xbf16, #tpu.memory_space<vmem>>, vector<32x64xbf16>
    %cst = arith.constant dense<0.000000e+00> : vector<16x64xf32>
    %3 = tpu.matmul %1, %2, %cst {dimension_numbers = #tpu.dot_dimension_numbers<[1], [0], [0], [1], [0, 0, 1, 1], [], []>} : vector<16x32xbf16>, vector<32x64xbf16>, vector<16x64xf32> -> vector<16x64xf32>
    %c0_4 = arith.constant 0 : index
    %c0_5 = arith.constant 0 : index
    %4 = vector.load %arg3[%c0_4, %c0_5] : memref<1x64xf32, #tpu.memory_space<vmem>>, vector<1x64xf32>
    %5 = vector.broadcast %4 : vector<1x64xf32> to vector<16x64xf32>
    %6 = arith.addf %3, %5 : vector<16x64xf32>
    %7 = math.tanh %6 : vector<16x64xf32>
    %8 = arith.truncf %7 : vector<16x64xf32> to vector<16x64xbf16>
    %9 = vector.shape_cast %8 : vector<16x64xbf16> to vector<1x16x64xbf16>
    %10 = vector.extract_strided_slice %7 {offsets = [0, 32], sizes = [16, 32], strides = [1, 1]} : vector<16x64xf32> to vector<16x32xf32>
    %11 = vector.extract_strided_slice %7 {offsets = [0, 0], sizes = [16, 32], strides = [1, 1]} : vector<16x64xf32> to vector<16x32xf32>
    %cst_6 = arith.constant 0.000000e+00 : f32
    %12 = vector.broadcast %cst_6 : f32 to vector<16x32xf32>
    %13 = arith.subf %12, %11 : vector<16x32xf32>
    %14 = tpu.concatenate %10, %13 in 1 : vector<16x32xf32>, vector<16x32xf32> -> vector<16x64xf32>
    %15 = arith.truncf %14 : vector<16x64xf32> to vector<16x64xbf16>
    %16 = vector.shape_cast %15 : vector<16x64xbf16> to vector<1x16x64xbf16>
    "tpu.trace_start"() <{level = 10 : i32, message = "bmk,bnk->bmn"}> : () -> ()
    %cst_7 = arith.constant dense<0.000000e+00> : vector<1x16x16xf32>
    %17 = tpu.matmul %9, %16, %cst_7 {dimension_numbers = #tpu.dot_dimension_numbers<[2], [2], [1], [1], [0, 0, 0, 1, 1, 1], [0], [0]>} : vector<1x16x64xbf16>, vector<1x16x64xbf16>, vector<1x16x16xf32> -> vector<1x16x16xf32>
    "tpu.trace_stop"() : () -> ()
    %cst_8 = arith.constant 1.000000e+00 : f32
    %18 = vector.broadcast %cst_8 : f32 to vector<1x16x16xf32>
    %19 = arith.mulf %18, %17 : vector<1x16x16xf32>
    %20 = math.tanh %19 : vector<1x16x16xf32>
    %cst_9 = arith.constant 0.000000e+00 : f32
    %21 = vector.broadcast %cst_9 : f32 to vector<1x16x16xf32>
    %22 = arith.maximumf %20, %21 : vector<1x16x16xf32>
    %23 = arith.truncf %22 : vector<1x16x16xf32> to vector<1x16x16xbf16>
    %c0_10 = arith.constant 0 : index
    %c0_11 = arith.constant 0 : index
    %c0_12 = arith.constant 0 : index
    %24 = vector.load %arg4[%c0_10, %c0_11, %c0_12] : memref<1x16x16xbf16, #tpu.memory_space<vmem>>, vector<1x16x16xbf16>
    tpu.vector_store %arg4[%c0_10, %c0_11, %c0_12], %23 {strides = array<i32>} : memref<1x16x16xbf16, #tpu.memory_space<vmem>>, vector<1x16x16xbf16>,
    return
  }
  func.func @transform_0(%arg0: i32) -> (i32, i32, i32) {
    %c0_i32 = arith.constant 0 : i32
    %c0_i32_0 = arith.constant 0 : i32
    %c0_i32_1 = arith.constant 0 : i32
    return %arg0, %c0_i32, %c0_i32_0 : i32, i32, i32
  }
  func.func @transform_1(%arg0: i32) -> (i32, i32) {
    %c0_i32 = arith.constant 0 : i32
    %c0_i32_0 = arith.constant 0 : i32
    %c0_i32_1 = arith.constant 0 : i32
    return %c0_i32, %c0_i32_0 : i32, i32
  }
  func.func @transform_2(%arg0: i32) -> (i32, i32) {
    %c0_i32 = arith.constant 0 : i32
    %c0_i32_0 = arith.constant 0 : i32
    %c0_i32_1 = arith.constant 0 : i32
    return %c0_i32, %c0_i32_0 : i32, i32
  }
  func.func @transform_3(%arg0: i32) -> (i32, i32, i32) {
    %c0_i32 = arith.constant 0 : i32
    %c0_i32_0 = arith.constant 0 : i32
    %c0_i32_1 = arith.constant 0 : i32
    return %arg0, %c0_i32, %c0_i32_0 : i32, i32, i32
  }
}

</mosaic_0001>

<llo_original>
// kernel: tpu_custom_call.1
$region0: #{tpu_custom_call.1}
  #allocation0 [shape = 'u32[]', space=smem, size = 0x4, offset = 0x4, fixed_abs, tag = 'smem constant byte address 0x4 - core index']
  #allocation1 [shape = 'u32[144,128]{1,0:T(1,128)}', space=vmem, size = 0x12000, scoped, tag = 'internal scratch']
  %s0 = inlined_call_operand.hbm [shape: bf16[2,16,32], index: 0, kind: input, shape index: {}]
  %s1 = inlined_call_operand.hbm [shape: bf16[32,64], index: 1, kind: input, shape index: {}]
  %s2 = inlined_call_operand.vmem [shape: f32[1,64], index: 2, kind: input, shape index: {}]
  %s3 = inlined_call_operand.hbm [shape: bf16[2,16,16], index: 3, kind: output, shape index: {}]
  %s4 = sld [smem:[#allocation0]]
  $region53: #{tpu_custom_call.1} parent=0
    _
  %s6 = ssub.s32 1, %s4
  %s7 = scalar_select 0, %s6, %s4
  $region1: #{tpu_custom_call.1} parent=0
    #allocation2 [shape = 'u8[8192]{0}', space=vmem, size = 0x2000, scoped, tag = 'input window, operand 0']
    #allocation3 [shape = 's32[2]{0}', space=sflag, size = 0x8, scoped, tag = 'scoped memory for tpu_custom_call.1']
    #allocation4 [shape = 's32[2]{0}', space=sflag, size = 0x8, scoped, tag = 'scoped memory for tpu_custom_call.1']
    #allocation5 [shape = 'u8[8192]{0}', space=vmem, size = 0x2000, scoped, tag = 'input window, operand 1, single buffered']
    #allocation6 [shape = 's32[1]{0}', space=sflag, size = 0x4, scoped, tag = 'scoped memory for tpu_custom_call.1']
    #allocation7 [shape = 'u8[8192]{0}', space=vmem, size = 0x2000, scoped, tag = 'output window, operand 0']
    %8 = vsyncpa [#allocation3], 0
    %s9 = scalar_lea.sflag [#allocation3], 1
    %10 = vsyncpa %s9, 0
    %11 = vsyncpa [#allocation6], 0
    %12 = vsyncpa [#allocation4], 0
    %s13 = scalar_lea.sflag [#allocation4], 1
    %14 = vsyncpa %s13, 0
    loop: start=0, step=1, limit=4
    $region2: #{tpu_custom_call.1} parent=1 // loop_pre_header
      _
    $region3: #{tpu_custom_call.1} parent=1 // loop_header
      %s16 = sphi 0, %s20
      %p17 = scmp.ge.s32.totalorder %s16, 4
      %s26 = sphi 0, %s28
      %s29 = sphi 0, %s26
      %s30 = sphi 0, %s29
      %s46 = sphi 0, %s30
      %s50 = sphi 0, %s50
      %s52 = sphi 0, %s50
      %s53 = sphi 0, %s52
      %s67 = sphi 0, %s53
      %s71 = sphi 0, %s71
      %s73 = sphi 0, %s71
      %s74 = sphi 0, %s73
      %s88 = sphi 0, %s74
      %s94 = sphi 0, %s96
      %s97 = sphi 0, %s94
      %s98 = sphi 0, %s97
      %s114 = sphi 0, %s98
    $region4: #{tpu_custom_call.1} parent=1 // loop_header_branch
      %19 = sbr.rel (%p17) target = $region8
    $region5: #{tpu_custom_call.1} parent=1 // loop_body
      %s21 = ssub.s32 %s16, 1
      %s22 = ssub.s32 %s16, 2
      %s23 = sadd.s32 %s16, 1
      %s24 = ssub.s32 %s16, %s23
      %p25 = scmp.eq.s32.totalorder %s24, 0
      %s27 = sadd.s32 %s26, 1
      %s28 = scalar_select %p25, %s26, %s27
      %p31 = pneg %p25
      %p32 = scmp.eq.s32.totalorder %s16, 1
      %p33 = por %p31, %p32
      %p34 = scmp.ne.s32.totalorder %s26, %s29
      %p35 = scmp.eq.s32.totalorder %s16, 0
      %p36 = por %p34, %p35
      %p37 = scmp.ne.s32.totalorder %s26, %s29
      %p38 = scmp.eq.s32.totalorder %s21, 1
      %p39 = por %p37, %p38
      %p40 = scmp.ne.s32.totalorder %s29, %s30
      %p41 = scmp.eq.s32.totalorder %s21, 0
      %p42 = por %p40, %p41
      %p43 = scmp.ne.s32.totalorder %s29, %s30
      %p44 = scmp.eq.s32.totalorder %s22, 1
      %p45 = por %p43, %p44
      %p47 = scmp.ne.s32.totalorder %s30, %s46
      %p48 = scmp.eq.s32.totalorder %s22, 0
      %p49 = por %p47, %p48
      %s51 = sadd.s32 %s50, 1
      %p54 = scmp.eq.s32.totalorder %s16, 1
      %p55 = scmp.ne.s32.totalorder %s50, %s52
      %p56 = scmp.eq.s32.totalorder %s16, 0
      %p57 = por %p55, %p56
      %p58 = scmp.ne.s32.totalorder %s50, %s52
      %p59 = scmp.eq.s32.totalorder %s21, 1
      %p60 = por %p58, %p59
      %p61 = scmp.ne.s32.totalorder %s52, %s53
      %p62 = scmp.eq.s32.totalorder %s21, 0
      %p63 = por %p61, %p62
      %p64 = scmp.ne.s32.totalorder %s52, %s53
      %p65 = scmp.eq.s32.totalorder %s22, 1
      %p66 = por %p64, %p65
      %p68 = scmp.ne.s32.totalorder %s53, %s67
      %p69 = scmp.eq.s32.totalorder %s22, 0
      %p70 = por %p68, %p69
      %s72 = sadd.s32 %s71, 1
      %p75 = scmp.eq.s32.totalorder %s16, 1
      %p76 = scmp.ne.s32.totalorder %s71, %s73
      %p77 = scmp.eq.s32.totalorder %s16, 0
      %p78 = por %p76, %p77
      %p79 = scmp.ne.s32.totalorder %s71, %s73
      %p80 = scmp.eq.s32.totalorder %s21, 1
      %p81 = por %p79, %p80
      %p82 = scmp.ne.s32.totalorder %s73, %s74
      %p83 = scmp.eq.s32.totalorder %s21, 0
      %p84 = por %p82, %p83
      %p85 = scmp.ne.s32.totalorder %s73, %s74
      %p86 = scmp.eq.s32.totalorder %s22, 1
      %p87 = por %p85, %p86
      %p89 = scmp.ne.s32.totalorder %s74, %s88
      %p90 = scmp.eq.s32.totalorder %s22, 0
      %p91 = por %p89, %p90
      %s92 = ssub.s32 %s16, %s23
      %p93 = scmp.eq.s32.totalorder %s92, 0
      %s95 = sadd.s32 %s94, 1
      %s96 = scalar_select %p93, %s94, %s95
      %p99 = pneg %p93
      %p100 = scmp.eq.s32.totalorder %s16, 1
      %p101 = por %p99, %p100
      %p102 = scmp.ne.s32.totalorder %s94, %s97
      %p103 = scmp.eq.s32.totalorder %s16, 0
      %p104 = por %p102, %p103
      %p105 = scmp.ne.s32.totalorder %s94, %s97
      %p106 = scmp.eq.s32.totalorder %s21, 1
      %p107 = por %p105, %p106
      %p108 = scmp.ne.s32.totalorder %s97, %s98
      %p109 = scmp.eq.s32.totalorder %s21, 0
      %p110 = por %p108, %p109
      %p111 = scmp.ne.s32.totalorder %s97, %s98
      %p112 = scmp.eq.s32.totalorder %s22, 1
      %p113 = por %p111, %p112
      %p115 = scmp.ne.s32.totalorder %s98, %s114
      %p116 = scmp.eq.s32.totalorder %s22, 0
      %p117 = por %p115, %p116
      %p118 = scmp.le.s32.totalorder 1, %s16
      %p119 = scmp.lt.s32.totalorder %s16, 3
      %p120 = pnand %p118, %p119
      %p121 = pneg %p120
      // Predicated region
      $region9: #{tpu_custom_call.1} parent=5 // pred_check
        _
      $region10: #{tpu_custom_call.1} parent=5 // pred_check_branch
        %123 = sbr.rel (%p120) target = $region12
      $region11: #{tpu_custom_call.1} parent=5 // pred_region
        %s124 = ssub.s32 %s16, 1
        // Predicated region
        $region13: #{tpu_custom_call.1} parent=11 // pred_check
          %p125 = pneg %p63
        $region14: #{tpu_custom_call.1} parent=11 // pred_check_branch
          %127 = sbr.rel (%p125) target = $region16
        $region15: #{tpu_custom_call.1} parent=11 // pred_region
          %s129 = ssub.s32 256, 256
          %130 = vsyncadd [#allocation6], %s129
          %s131 = sshll.u32 [#allocation5], 4
          %s132 = int_to_ptr.vmem [resolvable:$true] %s131
          %137 = dma.hbm_to_vmem [thread:$0]  %s1, 256, %s132, [#allocation6], 64, 64, 4
        $region16: #{tpu_custom_call.1} parent=11 // pred_fallthru
          _
        // Predicated region
        $region17: #{tpu_custom_call.1} parent=11 // pred_check
          %p138 = pneg %p84
        $region18: #{tpu_custom_call.1} parent=11 // pred_check_branch
          %140 = sbr.rel (%p138) target = $region20
        $region19: #{tpu_custom_call.1} parent=11 // pred_region
          _
        $region20: #{tpu_custom_call.1} parent=11 // pred_fallthru
          _
      $region12: #{tpu_custom_call.1} parent=5 // pred_fallthru
        _
      %p141 = scmp.lt.s32.totalorder %s16, 2
      // Predicated region
      $region21: #{tpu_custom_call.1} parent=5 // pred_check
        %p142 = pneg %p141
      $region22: #{tpu_custom_call.1} parent=5 // pred_check_branch
        %144 = sbr.rel (%p142) target = $region24
      $region23: #{tpu_custom_call.1} parent=5 // pred_region
        // Predicated region
        $region25: #{tpu_custom_call.1} parent=23 // pred_check
          %p145 = pneg %p36
        $region26: #{tpu_custom_call.1} parent=23 // pred_check_branch
          %147 = sbr.rel (%p145) target = $region28
        $region27: #{tpu_custom_call.1} parent=23 // pred_region
          %s148 = sand.u32 %s26, 1
          %s149 = scalar_lea.sflag [#allocation3], %s148
          %s150 = sand.u32 %s26, 1
          %s151 = smul.addr %s150, 8
          %s152 = scalar_lea.vmem [#allocation2], %s151
          %s154 = ssub.s32 128, 128
          %155 = vsyncadd %s149, %s154
          %s156 = smul.addr %s16, 2
          %s157 = smul.addr %s156, 64
          %s158 = scalar_lea.hbm %s0, %s157
          %s159 = sshll.u32 %s152, 4
          %s160 = int_to_ptr.vmem [resolvable:$true] %s159
          %165 = dma.hbm_to_vmem [thread:$0]  %s158, 128, %s160, %s149, 64, 64, 4
        $region28: #{tpu_custom_call.1} parent=23 // pred_fallthru
          _
      $region24: #{tpu_custom_call.1} parent=5 // pred_fallthru
        _
      %p166 = scmp.le.s32.totalorder 1, %s16
      %p167 = scmp.lt.s32.totalorder %s16, 3
      %p168 = pnand %p166, %p167
      %p169 = pneg %p168
      // Predicated region
      $region29: #{tpu_custom_call.1} parent=5 // pred_check
        _
      $region30: #{tpu_custom_call.1} parent=5 // pred_check_branch
        %171 = sbr.rel (%p168) target = $region32
      $region31: #{tpu_custom_call.1} parent=5 // pred_region
        %s172 = ssub.s32 %s16, 1
        %s173 = sand.u32 %s29, 1
        %s174 = scalar_lea.sflag [#allocation3], %s173
        %s175 = sand.u32 %s29, 1
        %s176 = smul.addr %s175, 8
        %s177 = scalar_lea.vmem [#allocation2], %s176
        // Predicated region
        $region33: #{tpu_custom_call.1} parent=31 // pred_check
          %p178 = pneg %p42
        $region34: #{tpu_custom_call.1} parent=31 // pred_check_branch
          %180 = sbr.rel (%p178) target = $region36
        $region35: #{tpu_custom_call.1} parent=31 // pred_region
          %181 = dma.done %s174, 128
        $region36: #{tpu_custom_call.1} parent=31 // pred_fallthru
          _
        // Predicated region
        $region37: #{tpu_custom_call.1} parent=31 // pred_check
          %p182 = pneg %p63
        $region38: #{tpu_custom_call.1} parent=31 // pred_check_branch
          %184 = sbr.rel (%p182) target = $region40
        $region39: #{tpu_custom_call.1} parent=31 // pred_region
          %185 = dma.done [#allocation6], 256
        $region40: #{tpu_custom_call.1} parent=31 // pred_fallthru
          _
        %s186 = sand.u32 %s29, 1
        %s187 = scalar_lea.sflag [#allocation3], %s186
        %s188 = sand.u32 %s29, 1
        %s189 = smul.addr %s188, 8
        %s190 = scalar_lea.vmem [#allocation2], %s189
        %p191 = pneg %p42
        %p192 = pneg %p39
        %p193 = pneg %p63
        %p194 = pneg %p60
        %p195 = pneg %p84
        %p196 = pneg %p81
        %p197 = pneg %p110
        %p198 = pneg %p107
        %s199 = sand.u32 %s97, 1
        %s200 = scalar_lea.sflag [#allocation4], %s199
        %s201 = sand.u32 %s97, 1
        %s202 = smul.addr %s201, 8
        %s203 = scalar_lea.vmem [#allocation7], %s202
        %v205 = vld [vmem:[%s177] sm:$0xf]
        %v206 = vld [vmem:[%s177 + $0x4] sm:$0xf]
        %v207 = vld [vmem:[#allocation5] sm:$0xf]
        %v208 = vld [vmem:[#allocation5 + $0x4] sm:$0xf]
        %v209 = vld [vmem:[#allocation5 + $0x8] sm:$0xf]
        %v210 = vld [vmem:[#allocation5 + $0xc] sm:$0xf]
        %v211 = vld [vmem:[%s2] sm:$0x1]
        %v213 = vlaneseq
        %v214 = vshrl.u32 %v213, 7
        %v215 = vsub.s32 0, %v214
        %v216 = vrot.slane %v211, %v215
        %v220 = vunpack.c.l.b16 %v205
        %v221 = vunpack.c.l.b16 %v206
        %v222 = vpack.c.b16 %v221, %v220
        %v227 = vunpack.c.l.b16 %v207
        %v228 = vunpack.c.l.b16 %v208
        %v229 = vunpack.c.l.b16 %v209
        %v230 = vunpack.c.l.b16 %v210
        %v231 = vpack.c.b16 %v228, %v227
        %v232 = vpack.c.b16 %v230, %v229
        %vm235 = vcmask 261120
        %v237 = vsel %vm235, %v222, 0
        %239 = vmatprep.subr.bf16.mxu0 0
        %240 = vmatpush1.bf16.msra.mxu0 %v231
        %241 = vmatprep.subr.bf16.mxu0 0
        %242 = vmatpush1.bf16.msra.mxu0 %v232
        %243 = vmatprep.subr.bf16.mxu0 0
        %244 = vmatpush1.bf16.msra.mxu0 0
        %245 = vmatprep.subr.bf16.mxu0 0
        %246 = vmatpush1.bf16.msra.mxu0 0
        %247 = vmatprep.subr.bf16.mxu0 0
        %248 = vmatpush1.bf16.msra.mxu0 0
        %249 = vmatprep.subr.bf16.mxu0 0
        %250 = vmatpush1.bf16.msra.mxu0 0
        %251 = vmatprep.subr.bf16.mxu0 0
        %252 = vmatpush1.bf16.msra.mxu0 0
        %253 = vmatprep.subr.bf16.mxu0 0
        %254 = vmatpush1.bf16.msra.mxu0 0
        %255 = vmatprep.subr.bf16.mxu0 0
        %256 = vmatpush1.bf16.msra.mxu0 0
        %257 = vmatprep.subr.bf16.mxu0 0
        %258 = vmatpush1.bf16.msra.mxu0 0
        %259 = vmatprep.subr.bf16.mxu0 0
        %260 = vmatpush1.bf16.msra.mxu0 0
        %261 = vmatprep.subr.bf16.mxu0 0
        %262 = vmatpush1.bf16.msra.mxu0 0
        %263 = vmatprep.subr.bf16.mxu0 0
        %264 = vmatpush1.bf16.msra.mxu0 0
        %265 = vmatprep.subr.bf16.mxu0 0
        %266 = vmatpush1.bf16.msra.mxu0 0
        %267 = vmatprep.subr.bf16.mxu0 0
        %268 = vmatpush1.bf16.msra.mxu0 0
        %269 = vmatprep.subr.bf16.mxu0 0
        %270 = vmatpush1.bf16.msra.mxu0 0
        %271 = vmatprep.mubr.bf16.mxu0 0
        %272 = vmatmul.mubr.bf16.gmra.mrb[0].mxu0 %v237
        %v273 = vpop.f32.mrb[0].mxu0
        %v274 = vadd.f32 %v216, %v273
        %v275 = vpop.f32.mrb[0].mxu0
        %v276 = vpop.f32.mrb[0].mxu0
        %v277 = vadd.f32 %v216, %v276
        %v278 = vpop.f32.mrb[0].mxu0
        %279 = vdwg.mxu0
        %v280 = vtanh.pop %v274
        %v281 = vtanh.pop %v277
        %v282 = vpack.c.bf16 %v281, %v280
        %v283 = vsub.f32 0.0, %v280
        %v284 = vsub.f32 0.0, %v281
        %287 = vrot.lane.b32.xlu0 %v280, 96
        %v288 = vpop.permute.xlu0 %287
        %289 = vrot.lane.b32.xlu0 %v281, 96
        %v290 = vpop.permute.xlu0 %289
        %295 = vrot.lane.b32.xlu0 %v283, 32
        %v296 = vpop.permute.xlu0 %295
        %297 = vrot.lane.b32.xlu0 %v284, 32
        %v298 = vpop.permute.xlu0 %297
        %v301 = vsel %vm235, %v288, %v296
        %v302 = vsel %vm235, %v290, %v298
        %v303 = vpack.c.bf16 %v302, %v301
        %vm304 = vcmask 523264
        %v306 = vsel %vm304, %v282, 0
        %v309 = vsel %vm304, %v303, 0
        %311 = vmatprep.subr.bf16.mxu0 0
        %312 = vmatpush1.bf16.xpose.msra.mxu0 %v309
        %313 = vmatprep.subr.bf16.mxu0 0
        %314 = vmatpush1.bf16.xpose.msra.mxu0 0
        %315 = vmatprep.subr.bf16.mxu0 0
        %316 = vmatpush1.bf16.xpose.msra.mxu0 0
        %317 = vmatprep.subr.bf16.mxu0 0
        %318 = vmatpush1.bf16.xpose.msra.mxu0 0
        %319 = vmatprep.subr.bf16.mxu0 0
        %320 = vmatpush1.bf16.xpose.msra.mxu0 0
        %321 = vmatprep.subr.bf16.mxu0 0
        %322 = vmatpush1.bf16.xpose.msra.mxu0 0
        %323 = vmatprep.subr.bf16.mxu0 0
        %324 = vmatpush1.bf16.xpose.msra.mxu0 0
        %325 = vmatprep.subr.bf16.mxu0 0
        %326 = vmatpush1.bf16.xpose.msra.mxu0 0
        %327 = vmatprep.subr.bf16.mxu0 0
        %328 = vmatpush1.bf16.xpose.msra.mxu0 0
        %329 = vmatprep.subr.bf16.mxu0 0
        %330 = vmatpush1.bf16.xpose.msra.mxu0 0
        %331 = vmatprep.subr.bf16.mxu0 0
        %332 = vmatpush1.bf16.xpose.msra.mxu0 0
        %333 = vmatprep.subr.bf16.mxu0 0
        %334 = vmatpush1.bf16.xpose.msra.mxu0 0
        %335 = vmatprep.subr.bf16.mxu0 0
        %336 = vmatpush1.bf16.xpose.msra.mxu0 0
        %337 = vmatprep.subr.bf16.mxu0 0
        %338 = vmatpush1.bf16.xpose.msra.mxu0 0
        %339 = vmatprep.subr.bf16.mxu0 0
        %340 = vmatpush1.bf16.xpose.msra.mxu0 0
        %341 = vmatprep.subr.bf16.mxu0 0
        %342 = vmatpush1.bf16.xpose.msra.mxu0 0
        %343 = vmatprep.mubr.bf16.mxu0 0
        %344 = vmatmul.mubr.bf16.gmra.mrb[0].mxu0 %v306
        %v345 = vpop.f32.mrb[0].mxu0
        %v346 = vadd.f32 0.0, %v345
        %v347 = vpop.f32.mrb[0].mxu0
        %v348 = vpop.f32.mrb[0].mxu0
        %v349 = vadd.f32 0.0, %v348
        %v350 = vpop.f32.mrb[0].mxu0
        %351 = vdwg.mxu0
        %v352 = vtanh.pop %v346
        %v353 = vtanh.pop %v349
        %v354 = vmax.f32 %v352, 0.0
        %v355 = vmax.f32 %v353, 0.0
        %v356 = vpack.c.bf16 %v355, %v354
        %v358 = vunpack.c.l.b16 %v356
        %v359 = vunpack.c.h.b16 %v356
        %v360 = vpack.c.b16 %v358, %v358
        %v361 = vpack.c.b16 %v359, %v359
        %vm364 = vcmask 125952
        %365 = vst.msk [vmem:[%s203] sm:$0xf] %vm364, %v360
        %366 = vst.msk [vmem:[%s203 + $0x4] sm:$0xf] %vm364, %v361
        %s367 = sand.u32 %s97, 1
        %s368 = scalar_lea.sflag [#allocation4], %s367
        %s369 = sand.u32 %s97, 1
        %s370 = smul.addr %s369, 8
        %s371 = scalar_lea.vmem [#allocation7], %s370
        // Predicated region
        $region41: #{tpu_custom_call.1} parent=31 // pred_check
          %p372 = pneg %p107
        $region42: #{tpu_custom_call.1} parent=31 // pred_check_branch
          %374 = sbr.rel (%p372) target = $region44
        $region43: #{tpu_custom_call.1} parent=31 // pred_region
          %s376 = ssub.s32 128, 128
          %377 = vsyncadd %s368, %s376
          %s378 = smul.addr %s21, 2
          %s379 = smul.addr %s378, 64
          %s380 = scalar_lea.hbm %s3, %s379
          %s381 = sshll.u32 %s371, 4
          %s382 = int_to_ptr.vmem [resolvable:$true] %s381
          %387 = dma.vmem_to_hbm [thread:$0]  %s382, 128, %s380, %s368, 64, 64, 4
        $region44: #{tpu_custom_call.1} parent=31 // pred_fallthru
          _
      $region32: #{tpu_custom_call.1} parent=5 // pred_fallthru
        _
      %p388 = scmp.le.s32.totalorder 2, %s16
      // Predicated region
      $region45: #{tpu_custom_call.1} parent=5 // pred_check
        %p389 = pneg %p388
      $region46: #{tpu_custom_call.1} parent=5 // pred_check_branch
        %391 = sbr.rel (%p389) target = $region48
      $region47: #{tpu_custom_call.1} parent=5 // pred_region
        %s392 = ssub.s32 %s16, 2
        // Predicated region
        $region49: #{tpu_custom_call.1} parent=47 // pred_check
          %p393 = pneg %p113
        $region50: #{tpu_custom_call.1} parent=47 // pred_check_branch
          %395 = sbr.rel (%p393) target = $region52
        $region51: #{tpu_custom_call.1} parent=47 // pred_region
          %s396 = sand.u32 %s98, 1
          %s397 = scalar_lea.sflag [#allocation4], %s396
          %s398 = sand.u32 %s98, 1
          %s399 = smul.addr %s398, 8
          %s400 = scalar_lea.vmem [#allocation7], %s399
          %401 = dma.done %s397, 128
        $region52: #{tpu_custom_call.1} parent=47 // pred_fallthru
          _
      $region48: #{tpu_custom_call.1} parent=5 // pred_fallthru
        _
    $region6: #{tpu_custom_call.1} parent=1 // loop_footer
      %s20 = sadd.s32 1, %s16
    $region7: #{tpu_custom_call.1} parent=1 // loop_footer_branch
      %15 = sbr.rel target = $region3
    $region8: #{tpu_custom_call.1} parent=1 // loop_exit
      _
    %402 = vsyncpa [#allocation3], 1
    %s403 = scalar_lea.sflag [#allocation3], 1
    %404 = vsyncpa %s403, 1
    %405 = vsyncpa [#allocation6], 1
    %406 = vsyncpa [#allocation4], 1
    %s407 = scalar_lea.sflag [#allocation4], 1
    %408 = vsyncpa %s407, 1

</llo_original>
